<compile_context>
chip_gen: v5e
topology: v5e:2x2
jax: 0.10.0
libtpu: 0.0.40
codegen_flags: <defaults>
</compile_context>

<pallas_src>
import math

import jax
import jax.numpy as jnp
from jax.experimental import pallas as pl
from jax.experimental.pallas import tpu as pltpu

# Folded constants: inner = x*(C1 + C3*x^2) where C1=sqrt(2/pi), C3=C1*0.044715.
_C1 = math.sqrt(2.0 / math.pi)
_C3 = _C1 * 0.044715


def _gelu_kernel(x_ref, o_ref):
    xf = x_ref[...].astype(jnp.float32)          # f32 math for accuracy on all gens
    x2 = xf * xf
    inner = xf * (_C1 + _C3 * x2)                # Horner form
    half_x = 0.5 * xf
    o_ref[...] = (half_x + half_x * jnp.tanh(inner)).astype(o_ref.dtype)


def _choose_lane(n):
    """Largest 'nice' multiple-of-128 lane width that evenly divides n (n % 128 == 0)."""
    for cand in (4096, 2048, 1024, 512, 384, 256, 128):
        if n % cand == 0:
            return cand
    return None


def _vmem_capacity_bytes():
    """Physical VMEM of this generation; conservative fallback if the query fails."""
    try:
        info = pltpu.get_tpu_info()
        cap = getattr(info, "vmem_capacity_bytes", None)
        if cap:
            return int(cap)
    except Exception:
        pass
    return 64 * 1024 * 1024  # v7x per-TC size (most restrictive)


def gelu(x, *, target_block_bytes=8 * 1024 * 1024):
    """tanh-GELU, elementwise, any shape / float dtype.  Output matches input layout."""
    if x.size == 0:
        return x

    orig_shape = x.shape
    dtype = x.dtype
    n_total = x.size
    itemsize = jnp.dtype(dtype).itemsize

    # --- Lane-dense 2D view.  Pad ragged totals up to a multiple of 128. ---
    lane = _choose_lane(n_total)
    if lane is not None:
        n_padded = n_total
        xf = x.reshape(-1)
    else:
        n_padded = ((n_total + 127) // 128) * 128
        xf = jnp.pad(x.reshape(-1), (0, n_padded - n_total))
        lane = _choose_lane(n_padded)  # guaranteed >= 128
    rows = n_padded // lane
    x2 = xf.reshape(rows, lane)

    # --- Per-generation VMEM ceiling (leave headroom for compiler scratch). ---
    vmem_ceiling = int(_vmem_capacity_bytes() * 0.75)
    # Budget ~5 blocks (2x double-buffered in + out, plus slack) within the ceiling.
    max_block_bytes = max(8 * 128 * itemsize, vmem_ceiling // 5)
    block_bytes_target = min(int(target_block_bytes), max_block_bytes)

    # --- Row-block size: byte-sized, sublane-aligned, and >= 2 grid steps when splittable. ---
    sub = max(8, 32 // max(1, itemsize))  # 8 for f32, 16 for bf16, 32 for 8-bit
    if rows <= sub:
        tm = rows                                     # tiny tensor: single full block (legal)
    else:
        target_rows = max(1, block_bytes_target // max(1, lane * itemsize))
        tm = min(target_rows, rows)
        tm = max(sub, (tm // sub) * sub)
        # Force >= 2 (ideally >= 4) grid steps so v7x's 2 TensorCores both get work.
        desired_steps = 4 if rows >= 4 * sub else 2
        tm_cap = max(sub, (pl.cdiv(rows, desired_steps) // sub) * sub)
        tm = max(sub, min(tm, tm_cap))

    grid = (pl.cdiv(rows, tm),)                       # ragged last block is masked by Pallas

    block_bytes = tm * lane * itemsize
    vmem_limit = int(min(vmem_ceiling, max(32 * 1024 * 1024, 5 * block_bytes)))

    out2 = pl.pallas_call(
        _gelu_kernel,
        out_shape=jax.ShapeDtypeStruct((rows, lane), dtype),
        grid_spec=pltpu.PrefetchScalarGridSpec(
            num_scalar_prefetch=0,
            grid=grid,
            in_specs=[pl.BlockSpec((tm, lane), lambda i: (i, 0))],
            out_specs=pl.BlockSpec((tm, lane), lambda i: (i, 0)),
        ),
        compiler_params=pltpu.CompilerParams(
            dimension_semantics=("parallel",),        # row axis shards across TCs on v7x
            vmem_limit_bytes=vmem_limit,
        ),
    )(x2)

    out_flat = out2.reshape(-1)
    if n_padded != n_total:
        out_flat = out_flat[:n_total]
    return out_flat.reshape(orig_shape)


def _gelu_ref(x):
    xf = x.astype(jnp.float32)
    return (0.5 * xf * (1.0 + jnp.tanh(math.sqrt(2.0 / math.pi) * (xf + 0.044715 * xf ** 3)))).astype(x.dtype)


if __name__ == "__main__":
    key = jax.random.PRNGKey(0)

    # GPT-style activations: (batch=2, seq=8, hidden=32)
    x = jax.random.normal(key, (2, 8, 32), dtype=jnp.float32)
    y = gelu(x)
    jax.block_until_ready(y)
    assert y.shape == x.shape and y.dtype == x.dtype
    assert jnp.allclose(y, _gelu_ref(x), atol=1e-6, rtol=1e-6), "mismatch vs reference (main)"

    # Multi-row lane-dense path with a >= 2-step grid.
    x_b = jax.random.normal(key, (8, 64, 128), dtype=jnp.float32)
    y_b = gelu(x_b)
    jax.block_until_ready(y_b)
    assert jnp.allclose(y_b, _gelu_ref(x_b), atol=1e-6, rtol=1e-6), "mismatch vs reference (b)"

    # Ragged total-size path (105 elems -> padded to 128, tail sliced off).
    x_c = jax.random.normal(key, (3, 5, 7), dtype=jnp.float32)
    y_c = gelu(x_c)
    jax.block_until_ready(y_c)
    assert jnp.allclose(y_c, _gelu_ref(x_c), atol=1e-6, rtol=1e-6), "mismatch vs reference (c)"

    # bf16 I/O (f32 intermediates inside the kernel).
    x_d = jax.random.normal(key, (4, 16, 96), dtype=jnp.bfloat16)
    y_d = gelu(x_d)
    jax.block_until_ready(y_d)
    assert jnp.allclose(y_d.astype(jnp.float32), _gelu_ref(x_d).astype(jnp.float32),
                        atol=2e-2, rtol=2e-2), "mismatch vs reference (d)"

    print("KERNEL_OK")
</pallas_src>

<mosaic_0001>
module attributes {stable_mosaic.version = 11 : i64} {
  func.func @_gelu_kernel(%arg0: i32, %arg1: memref<1x512xf32, #tpu.memory_space<vmem>>, %arg2: memref<1x512xf32, #tpu.memory_space<vmem>>) attributes {dimension_semantics = [#tpu.dimension_semantics<parallel>], iteration_bounds = array<i64: 1>, scalar_prefetch = 0 : i64, scratch_operands = 0 : i64, tpu.core_type = #tpu.core_type<tc>, window_params = [{transform_indices = @transform_0, window_bounds = array<i64: 1, 512>}, {transform_indices = @transform_1, window_bounds = array<i64: 1, 512>}]} {
    %c0 = arith.constant 0 : index
    %c0_0 = arith.constant 0 : index
    %0 = vector.load %arg1[%c0, %c0_0] : memref<1x512xf32, #tpu.memory_space<vmem>>, vector<1x512xf32>
    %1 = arith.mulf %0, %0 : vector<1x512xf32>
    %cst = arith.constant 0.0356774069 : f32
    %2 = vector.broadcast %cst : f32 to vector<1x512xf32>
    %3 = arith.mulf %2, %1 : vector<1x512xf32>
    %cst_1 = arith.constant 0.797884583 : f32
    %4 = vector.broadcast %cst_1 : f32 to vector<1x512xf32>
    %5 = arith.addf %4, %3 : vector<1x512xf32>
    %6 = arith.mulf %0, %5 : vector<1x512xf32>
    %cst_2 = arith.constant 5.000000e-01 : f32
    %7 = vector.broadcast %cst_2 : f32 to vector<1x512xf32>
    %8 = arith.mulf %7, %0 : vector<1x512xf32>
    %9 = math.tanh %6 : vector<1x512xf32>
    %10 = arith.mulf %8, %9 : vector<1x512xf32>
    %11 = arith.addf %8, %10 : vector<1x512xf32>
    %c0_3 = arith.constant 0 : index
    %c0_4 = arith.constant 0 : index
    %12 = vector.load %arg2[%c0_3, %c0_4] : memref<1x512xf32, #tpu.memory_space<vmem>>, vector<1x512xf32>
    tpu.vector_store %arg2[%c0_3, %c0_4], %11 {strides = array<i32>} : memref<1x512xf32, #tpu.memory_space<vmem>>, vector<1x512xf32>,
    return
  }
  func.func @transform_0(%arg0: i32) -> (i32, i32) {
    %c0_i32 = arith.constant 0 : i32
    %c0_i32_0 = arith.constant 0 : i32
    return %arg0, %c0_i32 : i32, i32
  }
  func.func @transform_1(%arg0: i32) -> (i32, i32) {
    %c0_i32 = arith.constant 0 : i32
    %c0_i32_0 = arith.constant 0 : i32
    return %arg0, %c0_i32 : i32, i32
  }
}

</mosaic_0001>

<llo_original>
// kernel: tpu_custom_call.1
$region0: #{tpu_custom_call.1}
  #allocation0 [shape = 'u32[]', space=smem, size = 0x4, offset = 0x4, fixed_abs, tag = 'smem constant byte address 0x4 - core index']
  #allocation1 [shape = 'u32[72,128]{1,0:T(1,128)}', space=vmem, size = 0x9000, scoped, tag = 'internal scratch']
  %s0 = inlined_call_operand.hbm [shape: f32[1,512], index: 0, kind: input, shape index: {}]
  %s1 = inlined_call_operand.hbm [shape: f32[1,512], index: 1, kind: output, shape index: {}]
  %s2 = sld [smem:[#allocation0]]
  $region18: #{tpu_custom_call.1} parent=0
    _
  %s4 = ssub.s32 1, %s2
  %s5 = scalar_select 0, %s4, %s2
  $region1: #{tpu_custom_call.1} parent=0
    #allocation2 [shape = 'u8[2048]{0}', space=vmem, size = 0x800, scoped, tag = 'input window, operand 0, single buffered']
    #allocation3 [shape = 's32[1]{0}', space=sflag, size = 0x4, scoped, tag = 'scoped memory for tpu_custom_call.1']
    #allocation4 [shape = 's32[1]{0}', space=sflag, size = 0x4, scoped, tag = 'scoped memory for tpu_custom_call.1']
    #allocation5 [shape = 'u8[2048]{0}', space=vmem, size = 0x800, scoped, tag = 'output window, operand 0, single buffered']
    %6 = vsyncpa [#allocation3], 0
    %7 = vsyncpa [#allocation4], 0
    // Predicated region
    $region2: #{tpu_custom_call.1} parent=1 // pred_check
      _
    $region3: #{tpu_custom_call.1} parent=1 // pred_check_branch
      %9 = sbr.rel (0) target = $region5
    $region4: #{tpu_custom_call.1} parent=1 // pred_region
      %11 = vsyncadd [#allocation3], 0
      %s13 = sshll.u32 %s0, 4
      %s14 = int_to_ptr.hbm [resolvable:$true] %s13
      %s15 = sshll.u32 [#allocation2], 4
      %s16 = int_to_ptr.vmem [resolvable:$true] %s15
      %18 = dma.hbm_to_vmem [thread:$0]  %s14, 64, %s16, [#allocation3]
    $region5: #{tpu_custom_call.1} parent=1 // pred_fallthru
      _
    // Predicated region
    $region6: #{tpu_custom_call.1} parent=1 // pred_check
      _
    $region7: #{tpu_custom_call.1} parent=1 // pred_check_branch
      %20 = sbr.rel (0) target = $region9
    $region8: #{tpu_custom_call.1} parent=1 // pred_region
      %22 = dma.done [#allocation3], 64
    $region9: #{tpu_custom_call.1} parent=1 // pred_fallthru
      _
    %v23 = vld [vmem:[#allocation2] sm:$0xf]
    %v24 = vmul.f32 %v23, %v23
    %v25 = vmul.f32 %v24, 0.035677407
    %v26 = vadd.f32 %v25, 0.7978846
    %v27 = vmul.f32 %v23, %v26
    %v28 = vmul.f32 %v23, 0.5
    %v29 = vtanh.pop %v27
    %v30 = vmul.f32 %v28, %v29
    %v31 = vadd.f32 %v28, %v30
    %v32 = vlaneseq
    %vm33 = vcmp.ge.s32.totalorder %v32, 0
    %vm34 = vcmp.lt.s32.totalorder %v32, 512
    %vm35 = vmand %vm33, %vm34
    %36 = vst.msk [vmem:[#allocation5] sm:$0xf] %vm35, %v31
    // Predicated region
    $region10: #{tpu_custom_call.1} parent=1 // pred_check
      _
    $region11: #{tpu_custom_call.1} parent=1 // pred_check_branch
      %38 = sbr.rel (0) target = $region13
    $region12: #{tpu_custom_call.1} parent=1 // pred_region
      %40 = vsyncadd [#allocation4], 0
      %s42 = sshll.u32 [#allocation5], 4
      %s43 = int_to_ptr.vmem [resolvable:$true] %s42
      %s44 = sshll.u32 %s1, 4
      %s45 = int_to_ptr.hbm [resolvable:$true] %s44
      %47 = dma.vmem_to_hbm [thread:$0]  %s43, 64, %s45, [#allocation4]
    $region13: #{tpu_custom_call.1} parent=1 // pred_fallthru
      _
    // Predicated region
    $region14: #{tpu_custom_call.1} parent=1 // pred_check
      _
    $region15: #{tpu_custom_call.1} parent=1 // pred_check_branch
      %49 = sbr.rel (0) target = $region17
    $region16: #{tpu_custom_call.1} parent=1 // pred_region
      %51 = dma.done [#allocation4], 64
    $region17: #{tpu_custom_call.1} parent=1 // pred_fallthru
      _
    %52 = vsyncpa [#allocation3], 1
    %53 = vsyncpa [#allocation4], 1

</llo_original>
